<compile_context>
chip_gen: v5e
topology: v5e:2x2
jax: 0.10.0
libtpu: 0.0.40
codegen_flags: <defaults>
</compile_context>

<pallas_src>
import math

import jax
import jax.numpy as jnp
from jax.experimental import pallas as pl
from jax.experimental.pallas import tpu as pltpu


def _lora_qkv_kernel(x_ref, wqkv_ref, bqkv_ref, wa_ref, wb_ref, o_ref):
    x = x_ref[...]                                            # (tm, C)  bf16

    # Frozen qkv projection (bf16 MXU, f32 accumulate).
    qkv = jnp.dot(x, wqkv_ref[...],
                  preferred_element_type=jnp.float32)         # (tm, 3C) f32

    # Fused LoRA: one A-matmul (C -> 2r), one block-diagonal B-matmul
    # (2r -> 3C) whose k columns are exactly zero, so adding the full-width
    # delta leaves the k slice untouched.
    ab = jnp.dot(x, wa_ref[...],
                 preferred_element_type=jnp.float32)          # (tm, 2r) f32
    delta = jnp.dot(ab.astype(wb_ref.dtype), wb_ref[...],
                    preferred_element_type=jnp.float32)       # (tm, 3C) f32

    o_ref[...] = (qkv + bqkv_ref[...] + delta).astype(o_ref.dtype)


def lora_qkv(x, w_qkv, b_qkv, w_a_q, w_b_q, w_a_v, w_b_v, *,
             tm=256, compute_dtype=jnp.bfloat16, vmem_limit_bytes=None):
    """LoRA-patched qkv projection.

    x: (B, H, W, C).  Weights follow the PyTorch nn.Linear convention
    (out_features, in_features); b_qkv is (3C,).
    """
    B, H, W, C = x.shape
    r = w_a_q.shape[0]
    M = B * H * W

    # Adapt the token tile: don't pad a tiny M all the way up to 256 rows.
    # tm must stay a multiple of 8 (sublane constraint) and divide M_pad.
    m_round8 = max(8, -(-M // 8) * 8)
    tm = min(tm, m_round8)
    grid_m = pl.cdiv(M, tm)
    M_pad = grid_m * tm

    # Tokens: flatten, cast to bf16, pad to a tile multiple.
    x2 = x.reshape(M, C).astype(compute_dtype)
    if M_pad != M:
        x2 = jnp.pad(x2, ((0, M_pad - M), (0, 0)))

    # Frozen qkv weights (transposed to (C, 3C)); bias kept f32 for the add.
    wqkv_t = w_qkv.T.astype(compute_dtype)                    # (C, 3C)
    bqkv_2d = b_qkv.reshape(1, 3 * C).astype(jnp.float32)     # (1, 3C)

    # Fused LoRA A: (C, 2r)  [q-rank columns first, then v-rank columns].
    wa_cat = jnp.concatenate([w_a_q.T, w_a_v.T], axis=1).astype(compute_dtype)

    # Fused block-diagonal LoRA B: (2r, 3C); k block stays exactly zero.
    wb_cat = jnp.zeros((2 * r, 3 * C), compute_dtype)
    wb_cat = wb_cat.at[:r, :C].set(w_b_q.T.astype(compute_dtype))
    wb_cat = wb_cat.at[r:, 2 * C:].set(w_b_v.T.astype(compute_dtype))

    # Weights / bias never change across the grid: single-buffer them.
    const_spec = lambda shape: pl.BlockSpec(                  # noqa: E731
        shape, lambda i: (0, 0), pipeline_mode=pl.Buffered(1))

    out = pl.pallas_call(
        _lora_qkv_kernel,
        out_shape=jax.ShapeDtypeStruct((M_pad, 3 * C), x.dtype),
        grid_spec=pltpu.PrefetchScalarGridSpec(
            num_scalar_prefetch=0,
            grid=(grid_m,),
            in_specs=[
                pl.BlockSpec((tm, C), lambda i: (i, 0)),      # x tile
                const_spec((C, 3 * C)),                       # W_qkv^T
                const_spec((1, 3 * C)),                       # b_qkv
                const_spec((C, 2 * r)),                       # [W_aq^T | W_av^T]
                const_spec((2 * r, 3 * C)),                   # block-diag B
            ],
            out_specs=pl.BlockSpec((tm, 3 * C), lambda i: (i, 0)),
        ),
        compiler_params=pltpu.CompilerParams(
            dimension_semantics=("parallel",),
            vmem_limit_bytes=vmem_limit_bytes),
    )(x2, wqkv_t, bqkv_2d, wa_cat, wb_cat)

    return out[:M].reshape(B, H, W, 3 * C)


def _reference(x, w_qkv, b_qkv, w_a_q, w_b_q, w_a_v, w_b_v,
               compute_dtype=jnp.bfloat16):
    """Mirror of the kernel math (same bf16 roundings, f32 accumulation)."""
    B, H, W, C = x.shape
    f32 = jnp.float32
    xc = x.astype(compute_dtype).astype(f32)
    wq = w_qkv.astype(compute_dtype).astype(f32)
    waq = w_a_q.astype(compute_dtype).astype(f32)
    wav = w_a_v.astype(compute_dtype).astype(f32)
    wbq = w_b_q.astype(compute_dtype).astype(f32)
    wbv = w_b_v.astype(compute_dtype).astype(f32)

    qkv = jnp.einsum("bhwc,oc->bhwo", xc, wq) + b_qkv.astype(f32)
    aq = jnp.einsum("bhwc,rc->bhwr", xc, waq).astype(compute_dtype).astype(f32)
    av = jnp.einsum("bhwc,rc->bhwr", xc, wav).astype(compute_dtype).astype(f32)
    new_q = jnp.einsum("bhwr,or->bhwo", aq, wbq)
    new_v = jnp.einsum("bhwr,or->bhwo", av, wbv)
    qkv = qkv.at[..., :C].add(new_q)
    qkv = qkv.at[..., -C:].add(new_v)
    return qkv.astype(x.dtype)


if __name__ == "__main__":
    # Small shapes consistent with the module: dim C, rank r, NHWC tokens.
    B, H, W, C, r = 2, 8, 8, 32, 4
    key = jax.random.PRNGKey(0)
    kx, kqkv, kb, kaq, kav, kbq, kbv = jax.random.split(key, 7)

    x = jax.random.normal(kx, (B, H, W, C), dtype=jnp.float32)

    # Frozen qkv Linear(dim, 3*dim): weight (3C, C), bias (3C,)
    w_qkv = jax.random.normal(kqkv, (3 * C, C), dtype=jnp.float32) * (1.0 / math.sqrt(C))
    b_qkv = jax.random.normal(kb, (3 * C,), dtype=jnp.float32) * 0.01

    # LoRA A: kaiming_uniform(a=sqrt(5)) -> U(-1/sqrt(fan_in), 1/sqrt(fan_in))
    bound = 1.0 / math.sqrt(C)
    w_a_q = jax.random.uniform(kaq, (r, C), minval=-bound, maxval=bound, dtype=jnp.float32)
    w_a_v = jax.random.uniform(kav, (r, C), minval=-bound, maxval=bound, dtype=jnp.float32)
    # LoRA B: module inits these to zeros; use small deterministic non-zeros
    # here so the LoRA add-path is actually exercised numerically.
    w_b_q = jax.random.normal(kbq, (C, r), dtype=jnp.float32) * 0.02
    w_b_v = jax.random.normal(kbv, (C, r), dtype=jnp.float32) * 0.02

    out = lora_qkv(x, w_qkv, b_qkv, w_a_q, w_b_q, w_a_v, w_b_v)
    out = jax.block_until_ready(out)

    ref = _reference(x, w_qkv, b_qkv, w_a_q, w_b_q, w_a_v, w_b_v)
    assert out.shape == (B, H, W, 3 * C)
    assert jnp.allclose(out, ref, atol=1e-2, rtol=1e-2), "mismatch vs reference"

    print("KERNEL_OK")
</pallas_src>

<mosaic_0001>
module attributes {stable_mosaic.version = 11 : i64} {
  func.func @_lora_qkv_kernel(%arg0: i32, %arg1: memref<128x32xbf16, #tpu.memory_space<vmem>>, %arg2: memref<32x96xbf16, #tpu.memory_space<vmem>>, %arg3: memref<1x96xf32, #tpu.memory_space<vmem>>, %arg4: memref<32x8xbf16, #tpu.memory_space<vmem>>, %arg5: memref<8x96xbf16, #tpu.memory_space<vmem>>, %arg6: memref<128x96xf32, #tpu.memory_space<vmem>>) attributes {dimension_semantics = [#tpu.dimension_semantics<parallel>], iteration_bounds = array<i64: 1>, scalar_prefetch = 0 : i64, scratch_operands = 0 : i64, tpu.core_type = #tpu.core_type<tc>, window_params = [{transform_indices = @transform_0, window_bounds = array<i64: 128, 32>}, {pipeline_mode = #tpu.pipeline_mode<synchronous>, transform_indices = @transform_1, window_bounds = array<i64: 32, 96>}, {pipeline_mode = #tpu.pipeline_mode<synchronous>, transform_indices = @transform_2, window_bounds = array<i64: 1, 96>}, {pipeline_mode = #tpu.pipeline_mode<synchronous>, transform_indices = @transform_3, window_bounds = array<i64: 32, 8>}, {pipeline_mode = #tpu.pipeline_mode<synchronous>, transform_indices = @transform_4, window_bounds = array<i64: 8, 96>}, {transform_indices = @transform_5, window_bounds = array<i64: 128, 96>}]} {
    %c0 = arith.constant 0 : index
    %c0_0 = arith.constant 0 : index
    %0 = vector.load %arg1[%c0, %c0_0] : memref<128x32xbf16, #tpu.memory_space<vmem>>, vector<128x32xbf16>
    %c0_1 = arith.constant 0 : index
    %c0_2 = arith.constant 0 : index
    %1 = vector.load %arg2[%c0_1, %c0_2] : memref<32x96xbf16, #tpu.memory_space<vmem>>, vector<32x96xbf16>
    %cst = arith.constant dense<0.000000e+00> : vector<128x96xf32>
    %2 = tpu.matmul %0, %1, %cst {dimension_numbers = #tpu.dot_dimension_numbers<[1], [0], [0], [1], [0, 0, 1, 1], [], []>} : vector<128x32xbf16>, vector<32x96xbf16>, vector<128x96xf32> -> vector<128x96xf32>
    %c0_3 = arith.constant 0 : index
    %c0_4 = arith.constant 0 : index
    %3 = vector.load %arg4[%c0_3, %c0_4] : memref<32x8xbf16, #tpu.memory_space<vmem>>, vector<32x8xbf16>
    %cst_5 = arith.constant dense<0.000000e+00> : vector<128x8xf32>
    %4 = tpu.matmul %0, %3, %cst_5 {dimension_numbers = #tpu.dot_dimension_numbers<[1], [0], [0], [1], [0, 0, 1, 1], [], []>} : vector<128x32xbf16>, vector<32x8xbf16>, vector<128x8xf32> -> vector<128x8xf32>
    %5 = arith.truncf %4 : vector<128x8xf32> to vector<128x8xbf16>
    %c0_6 = arith.constant 0 : index
    %c0_7 = arith.constant 0 : index
    %6 = vector.load %arg5[%c0_6, %c0_7] : memref<8x96xbf16, #tpu.memory_space<vmem>>, vector<8x96xbf16>
    %cst_8 = arith.constant dense<0.000000e+00> : vector<128x96xf32>
    %7 = tpu.matmul %5, %6, %cst_8 {dimension_numbers = #tpu.dot_dimension_numbers<[1], [0], [0], [1], [0, 0, 1, 1], [], []>} : vector<128x8xbf16>, vector<8x96xbf16>, vector<128x96xf32> -> vector<128x96xf32>
    %c0_9 = arith.constant 0 : index
    %c0_10 = arith.constant 0 : index
    %8 = vector.load %arg3[%c0_9, %c0_10] : memref<1x96xf32, #tpu.memory_space<vmem>>, vector<1x96xf32>
    %9 = vector.broadcast %8 : vector<1x96xf32> to vector<128x96xf32>
    %10 = arith.addf %2, %9 : vector<128x96xf32>
    %11 = arith.addf %10, %7 : vector<128x96xf32>
    %c0_11 = arith.constant 0 : index
    %c0_12 = arith.constant 0 : index
    %12 = vector.load %arg6[%c0_11, %c0_12] : memref<128x96xf32, #tpu.memory_space<vmem>>, vector<128x96xf32>
    tpu.vector_store %arg6[%c0_11, %c0_12], %11 {strides = array<i32>} : memref<128x96xf32, #tpu.memory_space<vmem>>, vector<128x96xf32>,
    return
  }
  func.func @transform_0(%arg0: i32) -> (i32, i32) {
    %c0_i32 = arith.constant 0 : i32
    %c0_i32_0 = arith.constant 0 : i32
    return %arg0, %c0_i32 : i32, i32
  }
  func.func @transform_1(%arg0: i32) -> (i32, i32) {
    %c0_i32 = arith.constant 0 : i32
    %c0_i32_0 = arith.constant 0 : i32
    %c0_i32_1 = arith.constant 0 : i32
    return %c0_i32, %c0_i32_0 : i32, i32
  }
  func.func @transform_2(%arg0: i32) -> (i32, i32) {
    %c0_i32 = arith.constant 0 : i32
    %c0_i32_0 = arith.constant 0 : i32
    %c0_i32_1 = arith.constant 0 : i32
    return %c0_i32, %c0_i32_0 : i32, i32
  }
  func.func @transform_3(%arg0: i32) -> (i32, i32) {
    %c0_i32 = arith.constant 0 : i32
    %c0_i32_0 = arith.constant 0 : i32
    %c0_i32_1 = arith.constant 0 : i32
    return %c0_i32, %c0_i32_0 : i32, i32
  }
  func.func @transform_4(%arg0: i32) -> (i32, i32) {
    %c0_i32 = arith.constant 0 : i32
    %c0_i32_0 = arith.constant 0 : i32
    %c0_i32_1 = arith.constant 0 : i32
    return %c0_i32, %c0_i32_0 : i32, i32
  }
  func.func @transform_5(%arg0: i32) -> (i32, i32) {
    %c0_i32 = arith.constant 0 : i32
    %c0_i32_0 = arith.constant 0 : i32
    return %arg0, %c0_i32 : i32, i32
  }
}

</mosaic_0001>

<llo_original>
// kernel: tpu_custom_call.1
$region0: #{tpu_custom_call.1}
  #allocation0 [shape = 'u32[]', space=smem, size = 0x4, offset = 0x4, fixed_abs, tag = 'smem constant byte address 0x4 - core index']
  #allocation1 [shape = 'u32[72,128]{1,0:T(1,128)}', space=vmem, size = 0x9000, scoped, tag = 'internal scratch']
  %s0 = inlined_call_operand.vmem [shape: bf16[128,32], index: 0, kind: input, shape index: {}]
  %s1 = inlined_call_operand.vmem [shape: bf16[32,96], index: 1, kind: input, shape index: {}]
  %s2 = inlined_call_operand.vmem [shape: f32[1,96], index: 2, kind: input, shape index: {}]
  %s3 = inlined_call_operand.vmem [shape: bf16[32,8], index: 3, kind: input, shape index: {}]
  %s4 = inlined_call_operand.vmem [shape: bf16[8,96], index: 4, kind: input, shape index: {}]
  %s5 = inlined_call_operand.vmem [shape: f32[128,96], index: 5, kind: output, shape index: {}]
  %s6 = sld [smem:[#allocation0]]
  $region30: #{tpu_custom_call.1} parent=0
    _
  %s8 = ssub.s32 1, %s6
  %s9 = scalar_select 0, %s8, %s6
  // Predicated region
  $region2: #{tpu_custom_call.1} parent=0 // pred_check
    _
  $region3: #{tpu_custom_call.1} parent=0 // pred_check_branch
    %11 = sbr.rel (0) target = $region5
  $region4: #{tpu_custom_call.1} parent=0 // pred_region
    _
  $region5: #{tpu_custom_call.1} parent=0 // pred_fallthru
    _
  // Predicated region
  $region6: #{tpu_custom_call.1} parent=0 // pred_check
    _
  $region7: #{tpu_custom_call.1} parent=0 // pred_check_branch
    %13 = sbr.rel (0) target = $region9
  $region8: #{tpu_custom_call.1} parent=0 // pred_region
    _
  $region9: #{tpu_custom_call.1} parent=0 // pred_fallthru
    _
  // Predicated region
  $region10: #{tpu_custom_call.1} parent=0 // pred_check
    _
  $region11: #{tpu_custom_call.1} parent=0 // pred_check_branch
    %15 = sbr.rel (0) target = $region13
  $region12: #{tpu_custom_call.1} parent=0 // pred_region
    _
  $region13: #{tpu_custom_call.1} parent=0 // pred_fallthru
    _
  // Predicated region
  $region14: #{tpu_custom_call.1} parent=0 // pred_check
    _
  $region15: #{tpu_custom_call.1} parent=0 // pred_check_branch
    %17 = sbr.rel (0) target = $region17
  $region16: #{tpu_custom_call.1} parent=0 // pred_region
    _
  $region17: #{tpu_custom_call.1} parent=0 // pred_fallthru
    _
  // Predicated region
  $region18: #{tpu_custom_call.1} parent=0 // pred_check
    _
  $region19: #{tpu_custom_call.1} parent=0 // pred_check_branch
    %19 = sbr.rel (0) target = $region21
  $region20: #{tpu_custom_call.1} parent=0 // pred_region
    _
  $region21: #{tpu_custom_call.1} parent=0 // pred_fallthru
    _
  %v21 = vld [vmem:[%s0] sm:$0xf]
  %v22 = vld [vmem:[%s0 + $0x4] sm:$0xf]
  %v23 = vld [vmem:[%s0 + $0x8] sm:$0xf]
  %v24 = vld [vmem:[%s0 + $0xc] sm:$0xf]
  %v25 = vld [vmem:[%s0 + $0x10] sm:$0xf]
  %v26 = vld [vmem:[%s0 + $0x14] sm:$0xf]
  %v27 = vld [vmem:[%s0 + $0x18] sm:$0xf]
  %v28 = vld [vmem:[%s0 + $0x1c] sm:$0xf]
  %v29 = vld [vmem:[%s0 + $0x20] sm:$0xf]
  %v30 = vld [vmem:[%s0 + $0x24] sm:$0xf]
  %v31 = vld [vmem:[%s0 + $0x28] sm:$0xf]
  %v32 = vld [vmem:[%s0 + $0x2c] sm:$0xf]
  %v33 = vld [vmem:[%s0 + $0x30] sm:$0xf]
  %v34 = vld [vmem:[%s0 + $0x34] sm:$0xf]
  %v35 = vld [vmem:[%s0 + $0x38] sm:$0xf]
  %v36 = vld [vmem:[%s0 + $0x3c] sm:$0xf]
  %v37 = vld [vmem:[%s1] sm:$0xf]
  %v38 = vld [vmem:[%s1 + $0x4] sm:$0xf]
  %v39 = vld [vmem:[%s1 + $0x8] sm:$0xf]
  %v40 = vld [vmem:[%s1 + $0xc] sm:$0xf]
  %v41 = vld [vmem:[%s3] sm:$0xf]
  %v42 = vld [vmem:[%s3 + $0x4] sm:$0xf]
  %v43 = vld [vmem:[%s3 + $0x8] sm:$0xf]
  %v44 = vld [vmem:[%s3 + $0xc] sm:$0xf]
  %v61 = vunpack.c.l.b16 %v21
  %v62 = vunpack.c.l.b16 %v22
  %v63 = vunpack.c.l.b16 %v23
  %v64 = vunpack.c.l.b16 %v24
  %v65 = vunpack.c.l.b16 %v25
  %v66 = vunpack.c.l.b16 %v26
  %v67 = vunpack.c.l.b16 %v27
  %v68 = vunpack.c.l.b16 %v28
  %v69 = vunpack.c.l.b16 %v29
  %v70 = vunpack.c.l.b16 %v30
  %v71 = vunpack.c.l.b16 %v31
  %v72 = vunpack.c.l.b16 %v32
  %v73 = vunpack.c.l.b16 %v33
  %v74 = vunpack.c.l.b16 %v34
  %v75 = vunpack.c.l.b16 %v35
  %v76 = vunpack.c.l.b16 %v36
  %v77 = vpack.c.b16 %v62, %v61
  %v78 = vpack.c.b16 %v64, %v63
  %v79 = vpack.c.b16 %v66, %v65
  %v80 = vpack.c.b16 %v68, %v67
  %v81 = vpack.c.b16 %v70, %v69
  %v82 = vpack.c.b16 %v72, %v71
  %v83 = vpack.c.b16 %v74, %v73
  %v84 = vpack.c.b16 %v76, %v75
  %v89 = vunpack.c.l.b16 %v41
  %v90 = vunpack.c.l.b16 %v42
  %v91 = vunpack.c.l.b16 %v43
  %v92 = vunpack.c.l.b16 %v44
  %v93 = vpack.c.b16 %v90, %v89
  %v94 = vpack.c.b16 %v92, %v91
  %vm97 = vcmask 261120
  %v99 = vsel %vm97, %v77, 0
  %v102 = vsel %vm97, %v78, 0
  %v105 = vsel %vm97, %v79, 0
  %v108 = vsel %vm97, %v80, 0
  %v111 = vsel %vm97, %v81, 0
  %v114 = vsel %vm97, %v82, 0
  %v117 = vsel %vm97, %v83, 0
  %v120 = vsel %vm97, %v84, 0
  %122 = vmatpush.bf16.msra.mxu0 0
  %123 = vmatpush.bf16.msra.mxu0 0
  %124 = vmatpush.bf16.msra.mxu0 0
  %125 = vmatpush.bf16.msra.mxu0 0
  %126 = vmatpush.bf16.msra.mxu0 0
  %127 = vmatpush.bf16.msra.mxu0 0
  %128 = vmatpush.bf16.msra.mxu0 %v94
  %129 = vmatpush.bf16.msra.mxu0 %v93
  %130 = vmatmul.bf16.gmra.mxu0 %v99
  %v131 = vpop.f32.mrf.mxu0
  %v132 = vadd.f32 0.0, %v131
  %v133 = vpop.f32.mrf.mxu0
  %v134 = vadd.f32 0.0, %v133
  %135 = vmatmul.bf16.gmra.mxu0 %v102
  %v136 = vpop.f32.mrf.mxu0
  %v137 = vadd.f32 0.0, %v136
  %v138 = vpop.f32.mrf.mxu0
  %v139 = vadd.f32 0.0, %v138
  %140 = vmatmul.bf16.gmra.mxu0 %v105
  %v141 = vpop.f32.mrf.mxu0
  %v142 = vadd.f32 0.0, %v141
  %v143 = vpop.f32.mrf.mxu0
  %v144 = vadd.f32 0.0, %v143
  %145 = vmatmul.bf16.gmra.mxu0 %v108
  %v146 = vpop.f32.mrf.mxu0
  %v147 = vadd.f32 0.0, %v146
  %v148 = vpop.f32.mrf.mxu0
  %v149 = vadd.f32 0.0, %v148
  %150 = vmatmul.bf16.gmra.mxu0 %v111
  %v151 = vpop.f32.mrf.mxu0
  %v152 = vadd.f32 0.0, %v151
  %v153 = vpop.f32.mrf.mxu0
  %v154 = vadd.f32 0.0, %v153
  %155 = vmatmul.bf16.gmra.mxu0 %v114
  %v156 = vpop.f32.mrf.mxu0
  %v157 = vadd.f32 0.0, %v156
  %v158 = vpop.f32.mrf.mxu0
  %v159 = vadd.f32 0.0, %v158
  %160 = vmatmul.bf16.gmra.mxu0 %v117
  %v161 = vpop.f32.mrf.mxu0
  %v162 = vadd.f32 0.0, %v161
  %v163 = vpop.f32.mrf.mxu0
  %v164 = vadd.f32 0.0, %v163
  %165 = vmatmul.bf16.gmra.mxu0 %v120
  %v166 = vpop.f32.mrf.mxu0
  %v167 = vadd.f32 0.0, %v166
  %v168 = vpop.f32.mrf.mxu0
  %v169 = vadd.f32 0.0, %v168
  %170 = vdwg.mxu0
  %v171 = vpack.c.bf16 %v134, %v132
  %v172 = vpack.c.bf16 %v139, %v137
  %v173 = vpack.c.bf16 %v144, %v142
  %v174 = vpack.c.bf16 %v149, %v147
  %v175 = vpack.c.bf16 %v154, %v152
  %v176 = vpack.c.bf16 %v159, %v157
  %v177 = vpack.c.bf16 %v164, %v162
  %v178 = vpack.c.bf16 %v169, %v167
  %v179 = vld [vmem:[%s4] sm:$0xf]
  %vm180 = vcmask 64512
  %v182 = vsel %vm180, %v171, 0
  %v185 = vsel %vm180, %v172, 0
  %v188 = vsel %vm180, %v173, 0
  %v191 = vsel %vm180, %v174, 0
  %v194 = vsel %vm180, %v175, 0
  %v197 = vsel %vm180, %v176, 0
  %v200 = vsel %vm180, %v177, 0
  %v203 = vsel %vm180, %v178, 0
  %vm205 = vcmask 1043456
  %v207 = vsel %vm205, %v179, 0
  %209 = vmatpush.bf16.msra.mxu0 0
  %210 = vmatpush.bf16.msra.mxu0 0
  %211 = vmatpush.bf16.msra.mxu0 0
  %212 = vmatpush.bf16.msra.mxu0 0
  %213 = vmatpush.bf16.msra.mxu0 0
  %214 = vmatpush.bf16.msra.mxu0 0
  %215 = vmatpush.bf16.msra.mxu0 0
  %216 = vmatpush.bf16.msra.mxu0 %v207
  %217 = vmatmul.bf16.gmra.mxu0 %v182
  %v218 = vpop.f32.mrf.mxu0
  %v219 = vadd.f32 0.0, %v218
  %v220 = vpop.f32.mrf.mxu0
  %v221 = vadd.f32 0.0, %v220
  %222 = vmatmul.bf16.gmra.mxu0 %v185
  %v223 = vpop.f32.mrf.mxu0
  %v224 = vadd.f32 0.0, %v223
  %v225 = vpop.f32.mrf.mxu0
  %v226 = vadd.f32 0.0, %v225
  %227 = vmatmul.bf16.gmra.mxu0 %v188
  %v228 = vpop.f32.mrf.mxu0
  %v229 = vadd.f32 0.0, %v228
  %v230 = vpop.f32.mrf.mxu0
  %v231 = vadd.f32 0.0, %v230
  %232 = vmatmul.bf16.gmra.mxu0 %v191
  %v233 = vpop.f32.mrf.mxu0
  %v234 = vadd.f32 0.0, %v233
  %v235 = vpop.f32.mrf.mxu0
  %v236 = vadd.f32 0.0, %v235
  %237 = vmatmul.bf16.gmra.mxu0 %v194
  %v238 = vpop.f32.mrf.mxu0
  %v239 = vadd.f32 0.0, %v238
  %v240 = vpop.f32.mrf.mxu0
  %v241 = vadd.f32 0.0, %v240
  %242 = vmatmul.bf16.gmra.mxu0 %v197
  %v243 = vpop.f32.mrf.mxu0
  %v244 = vadd.f32 0.0, %v243
  %v245 = vpop.f32.mrf.mxu0
  %v246 = vadd.f32 0.0, %v245
  %247 = vmatmul.bf16.gmra.mxu0 %v200
  %v248 = vpop.f32.mrf.mxu0
  %v249 = vadd.f32 0.0, %v248
  %v250 = vpop.f32.mrf.mxu0
  %v251 = vadd.f32 0.0, %v250
  %252 = vmatmul.bf16.gmra.mxu0 %v203
  %v253 = vpop.f32.mrf.mxu0
  %v254 = vadd.f32 0.0, %v253
  %v255 = vpop.f32.mrf.mxu0
  %v256 = vadd.f32 0.0, %v255
  %257 = vdwg.mxu0
  %v258 = vld [vmem:[%s2] sm:$0x1]
  %v260 = vperm.slane %v258, 0
  %v266 = vunpack.c.l.b16 %v37
  %v267 = vunpack.c.l.b16 %v38
  %v268 = vunpack.c.l.b16 %v39
  %v269 = vunpack.c.l.b16 %v40
  %v270 = vpack.c.b16 %v267, %v266
  %v271 = vpack.c.b16 %v269, %v268
  %274 = vmatpush.bf16.msra.mxu0 0
  %275 = vmatpush.bf16.msra.mxu0 0
  %276 = vmatpush.bf16.msra.mxu0 0
  %277 = vmatpush.bf16.msra.mxu0 0
  %278 = vmatpush.bf16.msra.mxu0 0
  %279 = vmatpush.bf16.msra.mxu0 0
  %280 = vmatpush.bf16.msra.mxu0 %v271
  %281 = vmatpush.bf16.msra.mxu0 %v270
  %282 = vmatmul.bf16.gmra.mxu0 %v99
  %v283 = vpop.f32.mrf.mxu0
  %v284 = vadd.f32 %v260, %v283
  %v285 = vpop.f32.mrf.mxu0
  %v286 = vadd.f32 %v260, %v285
  %287 = vmatmul.bf16.gmra.mxu0 %v102
  %v288 = vpop.f32.mrf.mxu0
  %v289 = vadd.f32 %v260, %v288
  %v290 = vpop.f32.mrf.mxu0
  %v291 = vadd.f32 %v260, %v290
  %292 = vmatmul.bf16.gmra.mxu0 %v105
  %v293 = vpop.f32.mrf.mxu0
  %v294 = vadd.f32 %v260, %v293
  %v295 = vpop.f32.mrf.mxu0
  %v296 = vadd.f32 %v260, %v295
  %297 = vmatmul.bf16.gmra.mxu0 %v108
  %v298 = vpop.f32.mrf.mxu0
  %v299 = vadd.f32 %v260, %v298
  %v300 = vpop.f32.mrf.mxu0
  %v301 = vadd.f32 %v260, %v300
  %302 = vmatmul.bf16.gmra.mxu0 %v111
  %v303 = vpop.f32.mrf.mxu0
  %v304 = vadd.f32 %v260, %v303
  %v305 = vpop.f32.mrf.mxu0
  %v306 = vadd.f32 %v260, %v305
  %307 = vmatmul.bf16.gmra.mxu0 %v114
  %v308 = vpop.f32.mrf.mxu0
  %v309 = vadd.f32 %v260, %v308
  %v310 = vpop.f32.mrf.mxu0
  %v311 = vadd.f32 %v260, %v310
  %312 = vmatmul.bf16.gmra.mxu0 %v117
  %v313 = vpop.f32.mrf.mxu0
  %v314 = vadd.f32 %v260, %v313
  %v315 = vpop.f32.mrf.mxu0
  %v316 = vadd.f32 %v260, %v315
  %317 = vmatmul.bf16.gmra.mxu0 %v120
  %v318 = vpop.f32.mrf.mxu0
  %v319 = vadd.f32 %v260, %v318
  %v320 = vpop.f32.mrf.mxu0
  %v321 = vadd.f32 %v260, %v320
  %322 = vdwg.mxu0
  %v323 = vadd.f32 %v284, %v219
  %v324 = vadd.f32 %v286, %v221
  %v325 = vadd.f32 %v289, %v224
  %v326 = vadd.f32 %v291, %v226
  %v327 = vadd.f32 %v294, %v229
  %v328 = vadd.f32 %v296, %v231
  %v329 = vadd.f32 %v299, %v234
  %v330 = vadd.f32 %v301, %v236
  %v331 = vadd.f32 %v304, %v239
  %v332 = vadd.f32 %v306, %v241
  %v333 = vadd.f32 %v309, %v244
  %v334 = vadd.f32 %v311, %v246
  %v335 = vadd.f32 %v314, %v249
  %v336 = vadd.f32 %v316, %v251
  %v337 = vadd.f32 %v319, %v254
  %v338 = vadd.f32 %v321, %v256
  %vm339 = vcmask 785408
  %340 = vst.msk [vmem:[%s5] sm:$0xff] %vm339, %v323
  %341 = vst.msk [vmem:[%s5 + $0x8] sm:$0xff] %vm339, %v324
  %342 = vst.msk [vmem:[%s5 + $0x10] sm:$0xff] %vm339, %v325
  %343 = vst.msk [vmem:[%s5 + $0x18] sm:$0xff] %vm339, %v326
  %344 = vst.msk [vmem:[%s5 + $0x20] sm:$0xff] %vm339, %v327
  %345 = vst.msk [vmem:[%s5 + $0x28] sm:$0xff] %vm339, %v328
  %346 = vst.msk [vmem:[%s5 + $0x30] sm:$0xff] %vm339, %v329
  %347 = vst.msk [vmem:[%s5 + $0x38] sm:$0xff] %vm339, %v330
  %348 = vst.msk [vmem:[%s5 + $0x40] sm:$0xff] %vm339, %v331
  %349 = vst.msk [vmem:[%s5 + $0x48] sm:$0xff] %vm339, %v332
  %350 = vst.msk [vmem:[%s5 + $0x50] sm:$0xff] %vm339, %v333
  %351 = vst.msk [vmem:[%s5 + $0x58] sm:$0xff] %vm339, %v334
  %352 = vst.msk [vmem:[%s5 + $0x60] sm:$0xff] %vm339, %v335
  %353 = vst.msk [vmem:[%s5 + $0x68] sm:$0xff] %vm339, %v336
  %354 = vst.msk [vmem:[%s5 + $0x70] sm:$0xff] %vm339, %v337
  %355 = vst.msk [vmem:[%s5 + $0x78] sm:$0xff] %vm339, %v338
  // Predicated region
  $region22: #{tpu_custom_call.1} parent=0 // pred_check
    _
  $region23: #{tpu_custom_call.1} parent=0 // pred_check_branch
    %357 = sbr.rel (0) target = $region25
  $region24: #{tpu_custom_call.1} parent=0 // pred_region
    _
  $region25: #{tpu_custom_call.1} parent=0 // pred_fallthru
    _
  // Predicated region
  $region26: #{tpu_custom_call.1} parent=0 // pred_check
    _
  $region27: #{tpu_custom_call.1} parent=0 // pred_check_branch
    %359 = sbr.rel (0) target = $region29
  $region28: #{tpu_custom_call.1} parent=0 // pred_region
    _
  $region29: #{tpu_custom_call.1} parent=0 // pred_fallthru
    _

</llo_original>
